<compile_context>
chip_gen: v5e
topology: v5e:2x2
jax: 0.10.0
libtpu: 0.0.40
codegen_flags: <defaults>
</compile_context>

<pallas_src>
import functools
from typing import NamedTuple

import jax
import jax.numpy as jnp
from jax.experimental import pallas as pl
from jax.experimental.pallas import tpu as pltpu


def _round_up(v, m):
    return (v + m - 1) // m * m


class EnsembleMeta(NamedTuple):
    num_models: int
    din: int
    hidden: int
    dout: int
    dinp: int
    hp: int
    doutp: int


def _ensemble_kernel(x_ref, w1_ref, b1_ref, coeff_ref, w2_ref, b2_ref,
                     y_ref, act_ref, *, num_models, hp):
    """One batch tile; the whole ensemble is evaluated inside this grid step.

    x_ref     : (tb, Dinp)     bf16  — padded input tile (pipelined over the grid)
    w1_ref    : (Dinp, M*Hp)   bf16  — layer-1 weights of ALL members, fused (VMEM-resident)
    b1_ref    : (1, M*Hp)      f32
    coeff_ref : (1, M*Hp)      f32   — softmax(weights)/M, repeated Hp times per member
    w2_ref    : (M*Hp, Doutp)  bf16  — layer-2 weights concatenated along K
    b2_ref    : (1, Doutp)     f32   — sum_m coeff_m * b2_m (precomputed)
    y_ref     : (tb, Doutp)    f32   — weighted mean over members
    act_ref   : (tb, Hp)       f32   — LAST member's hidden activations (loop leak)
    """
    x = x_ref[...]

    # ---- layer 1: one lane-dense GEMM over all ensemble members -----------
    # (tb, Dinp) @ (Dinp, M*Hp) -> (tb, M*Hp), f32 accumulation on the MXU.
    h_cat = jnp.dot(x, w1_ref[...], preferred_element_type=jnp.float32)
    h_cat = jnp.maximum(h_cat + b1_ref[...], 0.0)          # bias + relu in f32

    # ---- layer 2: fold coeff into f32 h, then ONE deep-K GEMM -------------
    # (tb, M*Hp) @ (M*Hp, Doutp) — fills the MXU with K = M*Hp instead of M small
    # K=Hp matmuls, and removes the per-member VPU accumulate passes.
    h_scaled = (h_cat * coeff_ref[...]).astype(w2_ref.dtype)
    y_ref[...] = (jnp.dot(h_scaled, w2_ref[...],
                          preferred_element_type=jnp.float32) + b2_ref[...])

    # ---- activation "leak": PyTorch's loop leaves the LAST member's acts ---
    act_ref[...] = h_cat[:, (num_models - 1) * hp:]


def prepare_ensemble_params(params, weight_dtype=jnp.bfloat16):
    """One-time layout work (hoisted out of the forward path per the perf review):
    cast to bf16, pad to MXU/lane-friendly sizes, fuse W1 across members and
    concatenate W2 along K.  Returns (prepared arrays, static shape metadata)."""
    w1, b1, w2, b2 = params["w1"], params["b1"], params["w2"], params["b2"]
    M, Din, H = w1.shape
    Dout = w2.shape[-1]
    Dinp = _round_up(Din, 128)
    Hp = _round_up(H, 128)
    Doutp = _round_up(Dout, 128)

    # Layer-1 weights fused across members -> (Dinp, M*Hp)
    w1p = jnp.pad(w1.astype(weight_dtype),
                  ((0, 0), (0, Dinp - Din), (0, Hp - H)))
    w1cat = jnp.transpose(w1p, (1, 0, 2)).reshape(Dinp, M * Hp)
    b1cat = jnp.pad(b1.astype(jnp.float32),
                    ((0, 0), (0, 0), (0, Hp - H))).reshape(1, M * Hp)

    # Layer-2 weights concatenated along K -> (M*Hp, Doutp); padded hidden rows are
    # zero and the corresponding h_cat entries are zero, so padding never contributes.
    w2cat = jnp.pad(w2.astype(weight_dtype),
                    ((0, 0), (0, Hp - H), (0, Doutp - Dout))).reshape(M * Hp, Doutp)
    # Keep b2 per-member in f32 so the runtime coeff can be folded at call time.
    b2p = jnp.pad(b2.astype(jnp.float32),
                  ((0, 0), (0, 0), (0, Doutp - Dout))).reshape(M, Doutp)

    prep = {"w1cat": w1cat, "b1cat": b1cat, "w2cat": w2cat, "b2": b2p}
    meta = EnsembleMeta(M, Din, H, Dout, Dinp, Hp, Doutp)
    return prep, meta


def ensemble_forward(x, prep, weights=None, *, meta, batch_tile=256):
    """x: (B, Din) f32.  prep/meta from prepare_ensemble_params.
    Returns (y_out (B, Dout), acts (B, H)) matching EnsembleNet.forward."""
    M, Din, H, Dout = meta.num_models, meta.din, meta.hidden, meta.dout
    Dinp, Hp, Doutp = meta.dinp, meta.hp, meta.doutp
    B = x.shape[0]
    w1cat, b1cat, w2cat, b2p = prep["w1cat"], prep["b1cat"], prep["w2cat"], prep["b2"]

    # Combination coefficients (softmax-then-STILL-mean, as in the PyTorch code):
    #   weights is None -> coeff = 1/M ;  else coeff = softmax(weights)/M
    if weights is None:
        coeff = jnp.full((M,), 1.0 / M, dtype=jnp.float32)
    else:
        coeff = jax.nn.softmax(weights.astype(jnp.float32), axis=0) / M
    # Lane-dense f32 coeff row (member-major, matching h_cat layout) + fused bias.
    coeff_row = jnp.repeat(coeff, Hp).reshape(1, M * Hp)
    b2sum = jnp.sum(coeff[:, None] * b2p, axis=0, keepdims=True)   # (1, Doutp)

    # ---- batch tiling: sublane-aligned; >= 2 grid steps when the batch allows
    # (so v7x's second TensorCore gets work on the "parallel" axis). -----------
    tb = _round_up(max(8, min(batch_tile, _round_up(B, 8))), 8)
    Bp = _round_up(B, tb)
    if Bp // tb < 2 and _round_up(B, 8) >= 16:
        tb = _round_up((_round_up(B, 8) + 1) // 2, 8)
        Bp = _round_up(B, tb)
    grid = (Bp // tb,)

    xp = jnp.pad(x.astype(w1cat.dtype), ((0, Bp - B), (0, Dinp - Din)))

    resident_weight_bytes = (w1cat.size * w1cat.dtype.itemsize
                             + w2cat.size * w2cat.dtype.itemsize)
    # TODO(synk): replace this guard with an M*Hp-tiling grid axis + f32 accumulator
    # once weight stacks outgrow VMEM (esp. v7x's 64 MiB).
    assert resident_weight_bytes < 40 * 1024 * 1024, (
        "resident weight stack too large for single-shot VMEM residency")

    flops = 2 * Bp * Dinp * (M * Hp) + 2 * Bp * (M * Hp) * Doutp
    bytes_accessed = (xp.size * xp.dtype.itemsize + resident_weight_bytes
                      + (b1cat.size + coeff_row.size + b2sum.size) * 4
                      + Bp * Doutp * 4 + Bp * Hp * 4)

    kernel = functools.partial(_ensemble_kernel, num_models=M, hp=Hp)
    # Grid-invariant operands: whole-array VMEM residency (single copy, no
    # double-buffering — the "single-buffer invariant weights" item).
    resident_vmem = pl.BlockSpec(memory_space=pltpu.MemorySpace.VMEM)

    y_pad, act_pad = pl.pallas_call(
        kernel,
        out_shape=(
            jax.ShapeDtypeStruct((Bp, Doutp), jnp.float32),   # y_out (padded)
            jax.ShapeDtypeStruct((Bp, Hp), jnp.float32),      # last member's h
        ),
        grid_spec=pltpu.PrefetchScalarGridSpec(
            num_scalar_prefetch=0,
            grid=grid,
            in_specs=[
                pl.BlockSpec((tb, Dinp), lambda i: (i, 0)),   # x tile (pipelined)
                resident_vmem,                                 # W1cat
                resident_vmem,                                 # b1cat
                resident_vmem,                                 # coeff row
                resident_vmem,                                 # W2cat
                resident_vmem,                                 # b2sum
            ],
            out_specs=[
                pl.BlockSpec((tb, Doutp), lambda i: (i, 0)),
                pl.BlockSpec((tb, Hp), lambda i: (i, 0)),
            ],
        ),
        # Batch-tile axis is independent -> "parallel"; the model reduction happens
        # inside one grid step (fused deep-K GEMM), so there is no accumulator race.
        compiler_params=pltpu.CompilerParams(
            dimension_semantics=("parallel",),
            vmem_limit_bytes=48 * 1024 * 1024),
        cost_estimate=pl.CostEstimate(flops=flops, transcendentals=0,
                                      bytes_accessed=bytes_accessed),
    )(xp, w1cat, b1cat, coeff_row, w2cat, b2sum)

    return y_pad[:B, :Dout], act_pad[:B, :H]


def _reference(x, params, weights=None, *, weight_dtype=jnp.bfloat16):
    """Pure-JAX reference reproducing the PyTorch EnsembleNet.forward member-by-member,
    with each member MLP evaluated in the same precision class as the kernel
    (bf16 matmuls, f32 accumulation / bias / relu)."""
    w1, b1, w2, b2 = params["w1"], params["b1"], params["w2"], params["b2"]
    M = w1.shape[0]
    xq = x.astype(weight_dtype)
    w1q = w1.astype(weight_dtype)
    w2q = w2.astype(weight_dtype)
    ys = []
    acts = None
    for m in range(M):
        h = jnp.dot(xq, w1q[m], preferred_element_type=jnp.float32) \
            + b1[m].astype(jnp.float32)
        h = jnp.maximum(h, 0.0)
        y = jnp.dot(h.astype(weight_dtype), w2q[m],
                    preferred_element_type=jnp.float32) \
            + b2[m].astype(jnp.float32)
        ys.append(y)
        acts = h                              # last member's activation leaks out
    ys = jnp.stack(ys, axis=0)
    if weights is not None:
        sw = jax.nn.softmax(weights.astype(jnp.float32), axis=0)
        ys = sw.reshape(M, 1, 1) * ys
    y_out = jnp.mean(ys, axis=0)              # unconditional mean, as in the source
    return y_out, acts


def make_params(key, M, Din, H, Dout):
    k1, k2, k3, k4 = jax.random.split(key, 4)
    scale1 = 1.0 / jnp.sqrt(Din)
    scale2 = 1.0 / jnp.sqrt(H)
    return {
        "w1": jax.random.normal(k1, (M, Din, H), jnp.float32) * scale1,
        "b1": jax.random.normal(k2, (M, 1, H), jnp.float32) * 0.1,
        "w2": jax.random.normal(k3, (M, H, Dout), jnp.float32) * scale2,
        "b2": jax.random.normal(k4, (M, 1, Dout), jnp.float32) * 0.1,
    }


if __name__ == "__main__":
    key = jax.random.PRNGKey(0)
    kx, kp, kw = jax.random.split(key, 3)

    M, B, Din, H, Dout = 3, 2, 16, 32, 16
    x = jax.random.normal(kx, (B, Din), jnp.float32)
    params = make_params(kp, M, Din, H, Dout)
    ens_weights = jax.random.normal(kw, (M,), jnp.float32)

    # One-time weight layout (hoisted out of the forward path).
    prep, meta = prepare_ensemble_params(params)
    fwd = jax.jit(functools.partial(ensemble_forward, meta=meta))

    # unweighted (weights=None) path
    y0, a0 = fwd(x, prep, None)
    jax.block_until_ready((y0, a0))
    y0_ref, a0_ref = _reference(x, params, None)
    assert jnp.allclose(y0, y0_ref, atol=3e-3, rtol=3e-3)
    assert jnp.allclose(a0, a0_ref, atol=3e-3, rtol=3e-3)

    # weighted path (softmax weights, then still mean — matching the PyTorch code)
    y1, a1 = fwd(x, prep, ens_weights)
    jax.block_until_ready((y1, a1))
    y1_ref, a1_ref = _reference(x, params, ens_weights)
    assert jnp.allclose(y1, y1_ref, atol=3e-3, rtol=3e-3)
    assert jnp.allclose(a1, a1_ref, atol=3e-3, rtol=3e-3)

    print("KERNEL_OK")
</pallas_src>

<mosaic_0001>
module attributes {stable_mosaic.version = 11 : i64} {
  func.func @_ensemble_kernel(%arg0: i32, %arg1: memref<8x128xbf16, #tpu.memory_space<vmem>>, %arg2: memref<128x384xbf16, #tpu.memory_space<vmem>>, %arg3: memref<1x384xf32, #tpu.memory_space<vmem>>, %arg4: memref<1x384xf32, #tpu.memory_space<vmem>>, %arg5: memref<384x128xbf16, #tpu.memory_space<vmem>>, %arg6: memref<1x128xf32, #tpu.memory_space<vmem>>, %arg7: memref<8x128xf32, #tpu.memory_space<vmem>>, %arg8: memref<8x128xf32, #tpu.memory_space<vmem>>) attributes {dimension_semantics = [#tpu.dimension_semantics<parallel>], iteration_bounds = array<i64: 1>, scalar_prefetch = 0 : i64, scratch_operands = 0 : i64, tpu.core_type = #tpu.core_type<tc>, window_params = [{transform_indices = @transform_0, window_bounds = array<i64: 8, 128>}, {pipeline_mode = #tpu.pipeline_mode<synchronous>, transform_indices = @transform_1, window_bounds = array<i64: 128, 384>}, {pipeline_mode = #tpu.pipeline_mode<synchronous>, transform_indices = @transform_2, window_bounds = array<i64: 1, 384>}, {pipeline_mode = #tpu.pipeline_mode<synchronous>, transform_indices = @transform_3, window_bounds = array<i64: 1, 384>}, {pipeline_mode = #tpu.pipeline_mode<synchronous>, transform_indices = @transform_4, window_bounds = array<i64: 384, 128>}, {pipeline_mode = #tpu.pipeline_mode<synchronous>, transform_indices = @transform_5, window_bounds = array<i64: 1, 128>}, {transform_indices = @transform_6, window_bounds = array<i64: 8, 128>}, {transform_indices = @transform_7, window_bounds = array<i64: 8, 128>}]} {
    %c0 = arith.constant 0 : index
    %c0_0 = arith.constant 0 : index
    %0 = vector.load %arg1[%c0, %c0_0] : memref<8x128xbf16, #tpu.memory_space<vmem>>, vector<8x128xbf16>
    %c0_1 = arith.constant 0 : index
    %c0_2 = arith.constant 0 : index
    %1 = vector.load %arg2[%c0_1, %c0_2] : memref<128x384xbf16, #tpu.memory_space<vmem>>, vector<128x384xbf16>
    %cst = arith.constant dense<0.000000e+00> : vector<8x384xf32>
    %2 = tpu.matmul %0, %1, %cst {dimension_numbers = #tpu.dot_dimension_numbers<[1], [0], [0], [1], [0, 0, 1, 1], [], []>} : vector<8x128xbf16>, vector<128x384xbf16>, vector<8x384xf32> -> vector<8x384xf32>
    %c0_3 = arith.constant 0 : index
    %c0_4 = arith.constant 0 : index
    %3 = vector.load %arg3[%c0_3, %c0_4] : memref<1x384xf32, #tpu.memory_space<vmem>>, vector<1x384xf32>
    %4 = vector.broadcast %3 : vector<1x384xf32> to vector<8x384xf32>
    %5 = arith.addf %2, %4 : vector<8x384xf32>
    %cst_5 = arith.constant 0.000000e+00 : f32
    %6 = vector.broadcast %cst_5 : f32 to vector<8x384xf32>
    %7 = arith.maximumf %5, %6 : vector<8x384xf32>
    %c0_6 = arith.constant 0 : index
    %c0_7 = arith.constant 0 : index
    %8 = vector.load %arg4[%c0_6, %c0_7] : memref<1x384xf32, #tpu.memory_space<vmem>>, vector<1x384xf32>
    %9 = vector.broadcast %8 : vector<1x384xf32> to vector<8x384xf32>
    %10 = arith.mulf %7, %9 : vector<8x384xf32>
    %11 = arith.truncf %10 : vector<8x384xf32> to vector<8x384xbf16>
    %c0_8 = arith.constant 0 : index
    %c0_9 = arith.constant 0 : index
    %12 = vector.load %arg5[%c0_8, %c0_9] : memref<384x128xbf16, #tpu.memory_space<vmem>>, vector<384x128xbf16>
    %cst_10 = arith.constant dense<0.000000e+00> : vector<8x128xf32>
    %13 = tpu.matmul %11, %12, %cst_10 {dimension_numbers = #tpu.dot_dimension_numbers<[1], [0], [0], [1], [0, 0, 1, 1], [], []>} : vector<8x384xbf16>, vector<384x128xbf16>, vector<8x128xf32> -> vector<8x128xf32>
    %c0_11 = arith.constant 0 : index
    %c0_12 = arith.constant 0 : index
    %14 = vector.load %arg6[%c0_11, %c0_12] : memref<1x128xf32, #tpu.memory_space<vmem>>, vector<1x128xf32>
    %15 = vector.broadcast %14 : vector<1x128xf32> to vector<8x128xf32>
    %16 = arith.addf %13, %15 : vector<8x128xf32>
    %c0_13 = arith.constant 0 : index
    %c0_14 = arith.constant 0 : index
    %17 = vector.load %arg7[%c0_13, %c0_14] : memref<8x128xf32, #tpu.memory_space<vmem>>, vector<8x128xf32>
    tpu.vector_store %arg7[%c0_13, %c0_14], %16 {strides = array<i32>} : memref<8x128xf32, #tpu.memory_space<vmem>>, vector<8x128xf32>,
    %18 = vector.extract_strided_slice %7 {offsets = [0, 256], sizes = [8, 128], strides = [1, 1]} : vector<8x384xf32> to vector<8x128xf32>
    %c0_15 = arith.constant 0 : index
    %c0_16 = arith.constant 0 : index
    %19 = vector.load %arg8[%c0_15, %c0_16] : memref<8x128xf32, #tpu.memory_space<vmem>>, vector<8x128xf32>
    tpu.vector_store %arg8[%c0_15, %c0_16], %18 {strides = array<i32>} : memref<8x128xf32, #tpu.memory_space<vmem>>, vector<8x128xf32>,
    return
  }
  func.func @transform_0(%arg0: i32) -> (i32, i32) {
    %c0_i32 = arith.constant 0 : i32
    %c0_i32_0 = arith.constant 0 : i32
    return %arg0, %c0_i32 : i32, i32
  }
  func.func @transform_1(%arg0: i32) -> (i32, i32) {
    %c0_i32 = arith.constant 0 : i32
    %c0_i32_0 = arith.constant 0 : i32
    %c0_i32_1 = arith.constant 0 : i32
    return %c0_i32, %c0_i32_0 : i32, i32
  }
  func.func @transform_2(%arg0: i32) -> (i32, i32) {
    %c0_i32 = arith.constant 0 : i32
    %c0_i32_0 = arith.constant 0 : i32
    %c0_i32_1 = arith.constant 0 : i32
    return %c0_i32, %c0_i32_0 : i32, i32
  }
  func.func @transform_3(%arg0: i32) -> (i32, i32) {
    %c0_i32 = arith.constant 0 : i32
    %c0_i32_0 = arith.constant 0 : i32
    %c0_i32_1 = arith.constant 0 : i32
    return %c0_i32, %c0_i32_0 : i32, i32
  }
  func.func @transform_4(%arg0: i32) -> (i32, i32) {
    %c0_i32 = arith.constant 0 : i32
    %c0_i32_0 = arith.constant 0 : i32
    %c0_i32_1 = arith.constant 0 : i32
    return %c0_i32, %c0_i32_0 : i32, i32
  }
  func.func @transform_5(%arg0: i32) -> (i32, i32) {
    %c0_i32 = arith.constant 0 : i32
    %c0_i32_0 = arith.constant 0 : i32
    %c0_i32_1 = arith.constant 0 : i32
    return %c0_i32, %c0_i32_0 : i32, i32
  }
  func.func @transform_6(%arg0: i32) -> (i32, i32) {
    %c0_i32 = arith.constant 0 : i32
    %c0_i32_0 = arith.constant 0 : i32
    return %arg0, %c0_i32 : i32, i32
  }
  func.func @transform_7(%arg0: i32) -> (i32, i32) {
    %c0_i32 = arith.constant 0 : i32
    %c0_i32_0 = arith.constant 0 : i32
    return %arg0, %c0_i32 : i32, i32
  }
}

</mosaic_0001>

<llo_original>
// kernel: ensemble_forward.1
$region0: #{ensemble_forward.1}
  #allocation0 [shape = 'u32[]', space=smem, size = 0x4, offset = 0x4, fixed_abs, tag = 'smem constant byte address 0x4 - core index']
  #allocation1 [shape = 'u32[72,128]{1,0:T(1,128)}', space=vmem, size = 0x9000, scoped, tag = 'internal scratch']
  %s0 = inlined_call_operand.vmem [shape: bf16[8,128], index: 0, kind: input, shape index: {}]
  %s1 = inlined_call_operand.hbm [shape: bf16[128,384], index: 1, kind: input, shape index: {}]
  %s2 = inlined_call_operand.vmem [shape: f32[1,384], index: 2, kind: input, shape index: {}]
  %s3 = inlined_call_operand.vmem [shape: f32[1,384], index: 3, kind: input, shape index: {}]
  %s4 = inlined_call_operand.hbm [shape: bf16[384,128], index: 4, kind: input, shape index: {}]
  %s5 = inlined_call_operand.vmem [shape: f32[1,128], index: 5, kind: input, shape index: {}]
  %s6 = inlined_call_operand.vmem [shape: f32[8,128], index: 6, kind: output, shape index: {0}]
  %s7 = inlined_call_operand.vmem [shape: f32[8,128], index: 7, kind: output, shape index: {1}]
  %8 = xla_tuple %s6, %s7
  %s9 = sld [smem:[#allocation0]]
  $region50: #{ensemble_forward.1} parent=0
    _
  %s11 = ssub.s32 1, %s9
  %s12 = scalar_select 0, %s11, %s9
  $region1: #{ensemble_forward.1} parent=0
    #allocation2 [shape = 'u8[98304]{0}', space=vmem, size = 0x18000, scoped, tag = 'input window, operand 1, single buffered']
    #allocation3 [shape = 's32[1]{0}', space=sflag, size = 0x4, scoped, tag = 'scoped memory for ensemble_forward.1']
    #allocation4 [shape = 'u8[98304]{0}', space=vmem, size = 0x18000, scoped, tag = 'input window, operand 4, single buffered']
    #allocation5 [shape = 's32[1]{0}', space=sflag, size = 0x4, scoped, tag = 'scoped memory for ensemble_forward.1']
    %13 = vsyncpa [#allocation3], 0
    %14 = vsyncpa [#allocation5], 0
    // Predicated region
    $region2: #{ensemble_forward.1} parent=1 // pred_check
      _
    $region3: #{ensemble_forward.1} parent=1 // pred_check_branch
      %16 = sbr.rel (0) target = $region5
    $region4: #{ensemble_forward.1} parent=1 // pred_region
      _
    $region5: #{ensemble_forward.1} parent=1 // pred_fallthru
      _
    // Predicated region
    $region6: #{ensemble_forward.1} parent=1 // pred_check
      _
    $region7: #{ensemble_forward.1} parent=1 // pred_check_branch
      %18 = sbr.rel (0) target = $region9
    $region8: #{ensemble_forward.1} parent=1 // pred_region
      %20 = vsyncadd [#allocation3], 0
      %s21 = sshll.u32 %s1, 4
      %s22 = int_to_ptr.hbm [resolvable:$true] %s21
      %s23 = sshll.u32 [#allocation2], 4
      %s24 = int_to_ptr.vmem [resolvable:$true] %s23
      %29 = dma.hbm_to_vmem [thread:$0]  %s22, 3072, %s24, [#allocation3], 192, 192, 12
    $region9: #{ensemble_forward.1} parent=1 // pred_fallthru
      _
    // Predicated region
    $region10: #{ensemble_forward.1} parent=1 // pred_check
      _
    $region11: #{ensemble_forward.1} parent=1 // pred_check_branch
      %31 = sbr.rel (0) target = $region13
    $region12: #{ensemble_forward.1} parent=1 // pred_region
      _
    $region13: #{ensemble_forward.1} parent=1 // pred_fallthru
      _
    // Predicated region
    $region14: #{ensemble_forward.1} parent=1 // pred_check
      _
    $region15: #{ensemble_forward.1} parent=1 // pred_check_branch
      %33 = sbr.rel (0) target = $region17
    $region16: #{ensemble_forward.1} parent=1 // pred_region
      _
    $region17: #{ensemble_forward.1} parent=1 // pred_fallthru
      _
    // Predicated region
    $region18: #{ensemble_forward.1} parent=1 // pred_check
      _
    $region19: #{ensemble_forward.1} parent=1 // pred_check_branch
      %35 = sbr.rel (0) target = $region21
    $region20: #{ensemble_forward.1} parent=1 // pred_region
      %37 = vsyncadd [#allocation5], 0
      %s38 = sshll.u32 %s4, 4
      %s39 = int_to_ptr.hbm [resolvable:$true] %s38
      %s40 = sshll.u32 [#allocation4], 4
      %s41 = int_to_ptr.vmem [resolvable:$true] %s40
      %46 = dma.hbm_to_vmem [thread:$0]  %s39, 3072, %s41, [#allocation5], 64, 64, 4
    $region21: #{ensemble_forward.1} parent=1 // pred_fallthru
      _
    // Predicated region
    $region22: #{ensemble_forward.1} parent=1 // pred_check
      _
    $region23: #{ensemble_forward.1} parent=1 // pred_check_branch
      %48 = sbr.rel (0) target = $region25
    $region24: #{ensemble_forward.1} parent=1 // pred_region
      _
    $region25: #{ensemble_forward.1} parent=1 // pred_fallthru
      _
    // Predicated region
    $region26: #{ensemble_forward.1} parent=1 // pred_check
      _
    $region27: #{ensemble_forward.1} parent=1 // pred_check_branch
      %50 = sbr.rel (0) target = $region29
    $region28: #{ensemble_forward.1} parent=1 // pred_region
      %52 = dma.done [#allocation3], 3072
    $region29: #{ensemble_forward.1} parent=1 // pred_fallthru
      _
    // Predicated region
    $region30: #{ensemble_forward.1} parent=1 // pred_check
      _
    $region31: #{ensemble_forward.1} parent=1 // pred_check_branch
      %54 = sbr.rel (0) target = $region33
    $region32: #{ensemble_forward.1} parent=1 // pred_region
      %56 = dma.done [#allocation5], 3072
    $region33: #{ensemble_forward.1} parent=1 // pred_fallthru
      _
    %v57 = vld [vmem:[%s0] sm:$0xf]
    %v58 = vld [vmem:[#allocation2] sm:$0xff]
    %v59 = vld [vmem:[#allocation2 + $0x8] sm:$0xf]
    %v60 = vld [vmem:[#allocation2 + $0xc] sm:$0xff]
    %v61 = vld [vmem:[#allocation2 + $0x14] sm:$0xf]
    %v62 = vld [vmem:[#allocation2 + $0x18] sm:$0xff]
    %v63 = vld [vmem:[#allocation2 + $0x20] sm:$0xf]
    %v64 = vld [vmem:[#allocation2 + $0x24] sm:$0xff]
    %v65 = vld [vmem:[#allocation2 + $0x2c] sm:$0xf]
    %v66 = vld [vmem:[#allocation2 + $0x30] sm:$0xff]
    %v67 = vld [vmem:[#allocation2 + $0x38] sm:$0xf]
    %v68 = vld [vmem:[#allocation2 + $0x3c] sm:$0xff]
    %v69 = vld [vmem:[#allocation2 + $0x44] sm:$0xf]
    %v70 = vld [vmem:[#allocation2 + $0x48] sm:$0xff]
    %v71 = vld [vmem:[#allocation2 + $0x50] sm:$0xf]
    %v72 = vld [vmem:[#allocation2 + $0x54] sm:$0xff]
    %v73 = vld [vmem:[#allocation2 + $0x5c] sm:$0xf]
    %v74 = vld [vmem:[#allocation2 + $0x60] sm:$0xff]
    %v75 = vld [vmem:[#allocation2 + $0x68] sm:$0xf]
    %v76 = vld [vmem:[#allocation2 + $0x6c] sm:$0xff]
    %v77 = vld [vmem:[#allocation2 + $0x74] sm:$0xf]
    %v78 = vld [vmem:[#allocation2 + $0x78] sm:$0xff]
    %v79 = vld [vmem:[#allocation2 + $0x80] sm:$0xf]
    %v80 = vld [vmem:[#allocation2 + $0x84] sm:$0xff]
    %v81 = vld [vmem:[#allocation2 + $0x8c] sm:$0xf]
    %v82 = vld [vmem:[#allocation2 + $0x90] sm:$0xff]
    %v83 = vld [vmem:[#allocation2 + $0x98] sm:$0xf]
    %v84 = vld [vmem:[#allocation2 + $0x9c] sm:$0xff]
    %v85 = vld [vmem:[#allocation2 + $0xa4] sm:$0xf]
    %v86 = vld [vmem:[#allocation2 + $0xa8] sm:$0xff]
    %v87 = vld [vmem:[#allocation2 + $0xb0] sm:$0xf]
    %v88 = vld [vmem:[#allocation2 + $0xb4] sm:$0xff]
    %v89 = vld [vmem:[#allocation2 + $0xbc] sm:$0xf]
    %v90 = vld [vmem:[%s2] sm:$0x7]
    %v92 = vperm.slane %v90, 0
    %v93 = vperm.slane %v90, 1
    %v94 = vperm.slane %v90, 2
    %v130 = vunpack.c.l.b16 %v58
    %v131 = vunpack.c.h.b16 %v58
    %v132 = vunpack.c.l.b16 %v59
    %v133 = vunpack.c.l.b16 %v60
    %v134 = vunpack.c.h.b16 %v60
    %v135 = vunpack.c.l.b16 %v61
    %v136 = vunpack.c.l.b16 %v62
    %v137 = vunpack.c.h.b16 %v62
    %v138 = vunpack.c.l.b16 %v63
    %v139 = vunpack.c.l.b16 %v64
    %v140 = vunpack.c.h.b16 %v64
    %v141 = vunpack.c.l.b16 %v65
    %v142 = vunpack.c.l.b16 %v66
    %v143 = vunpack.c.h.b16 %v66
    %v144 = vunpack.c.l.b16 %v67
    %v145 = vunpack.c.l.b16 %v68
    %v146 = vunpack.c.h.b16 %v68
    %v147 = vunpack.c.l.b16 %v69
    %v148 = vunpack.c.l.b16 %v70
    %v149 = vunpack.c.h.b16 %v70
    %v150 = vunpack.c.l.b16 %v71
    %v151 = vunpack.c.l.b16 %v72
    %v152 = vunpack.c.h.b16 %v72
    %v153 = vunpack.c.l.b16 %v73
    %v154 = vunpack.c.l.b16 %v74
    %v155 = vunpack.c.h.b16 %v74
    %v156 = vunpack.c.l.b16 %v75
    %v157 = vunpack.c.l.b16 %v76
    %v158 = vunpack.c.h.b16 %v76
    %v159 = vunpack.c.l.b16 %v77
    %v160 = vunpack.c.l.b16 %v78
    %v161 = vunpack.c.h.b16 %v78
    %v162 = vunpack.c.l.b16 %v79
    %v163 = vunpack.c.l.b16 %v80
    %v164 = vunpack.c.h.b16 %v80
    %v165 = vunpack.c.l.b16 %v81
    %v166 = vunpack.c.l.b16 %v82
    %v167 = vunpack.c.h.b16 %v82
    %v168 = vunpack.c.l.b16 %v83
    %v169 = vunpack.c.l.b16 %v84
    %v170 = vunpack.c.h.b16 %v84
    %v171 = vunpack.c.l.b16 %v85
    %v172 = vunpack.c.l.b16 %v86
    %v173 = vunpack.c.h.b16 %v86
    %v174 = vunpack.c.l.b16 %v87
    %v175 = vunpack.c.l.b16 %v88
    %v176 = vunpack.c.h.b16 %v88
    %v177 = vunpack.c.l.b16 %v89
    %v178 = vpack.c.b16 %v133, %v130
    %v179 = vpack.c.b16 %v134, %v131
    %v180 = vpack.c.b16 %v135, %v132
    %v181 = vpack.c.b16 %v139, %v136
    %v182 = vpack.c.b16 %v140, %v137
    %v183 = vpack.c.b16 %v141, %v138
    %v184 = vpack.c.b16 %v145, %v142
    %v185 = vpack.c.b16 %v146, %v143
    %v186 = vpack.c.b16 %v147, %v144
    %v187 = vpack.c.b16 %v151, %v148
    %v188 = vpack.c.b16 %v152, %v149
    %v189 = vpack.c.b16 %v153, %v150
    %v190 = vpack.c.b16 %v157, %v154
    %v191 = vpack.c.b16 %v158, %v155
    %v192 = vpack.c.b16 %v159, %v156
    %v193 = vpack.c.b16 %v163, %v160
    %v194 = vpack.c.b16 %v164, %v161
    %v195 = vpack.c.b16 %v165, %v162
    %v196 = vpack.c.b16 %v169, %v166
    %v197 = vpack.c.b16 %v170, %v167
    %v198 = vpack.c.b16 %v171, %v168
    %v199 = vpack.c.b16 %v175, %v172
    %v200 = vpack.c.b16 %v176, %v173
    %v201 = vpack.c.b16 %v177, %v174
    %226 = vmatpush.bf16.msra.mxu0 %v199
    %227 = vmatpush.bf16.msra.mxu0 %v196
    %228 = vmatpush.bf16.msra.mxu0 %v193
    %229 = vmatpush.bf16.msra.mxu0 %v190
    %230 = vmatpush.bf16.msra.mxu0 %v187
    %231 = vmatpush.bf16.msra.mxu0 %v184
    %232 = vmatpush.bf16.msra.mxu0 %v181
    %233 = vmatpush.bf16.msra.mxu0 %v178
    %234 = vmatmul.bf16.gmra.mxu0 %v57
    %v235 = vpop.f32.mrf.mxu0
    %v236 = vadd.f32 %v92, %v235
    %v237 = vpop.f32.mrf.mxu0
    %238 = vdwg.mxu0
    %239 = vmatpush.bf16.msra.mxu0 %v200
    %240 = vmatpush.bf16.msra.mxu0 %v197
    %241 = vmatpush.bf16.msra.mxu0 %v194
    %242 = vmatpush.bf16.msra.mxu0 %v191
    %243 = vmatpush.bf16.msra.mxu0 %v188
    %244 = vmatpush.bf16.msra.mxu0 %v185
    %245 = vmatpush.bf16.msra.mxu0 %v182
    %246 = vmatpush.bf16.msra.mxu0 %v179
    %247 = vmatmul.bf16.gmra.mxu0 %v57
    %v248 = vpop.f32.mrf.mxu0
    %v249 = vadd.f32 %v93, %v248
    %v250 = vpop.f32.mrf.mxu0
    %251 = vdwg.mxu0
    %252 = vmatpush.bf16.msra.mxu0 %v201
    %253 = vmatpush.bf16.msra.mxu0 %v198
    %254 = vmatpush.bf16.msra.mxu0 %v195
    %255 = vmatpush.bf16.msra.mxu0 %v192
    %256 = vmatpush.bf16.msra.mxu0 %v189
    %257 = vmatpush.bf16.msra.mxu0 %v186
    %258 = vmatpush.bf16.msra.mxu0 %v183
    %259 = vmatpush.bf16.msra.mxu0 %v180
    %260 = vmatmul.bf16.gmra.mxu0 %v57
    %v261 = vpop.f32.mrf.mxu0
    %v262 = vadd.f32 %v94, %v261
    %v263 = vpop.f32.mrf.mxu0
    %264 = vdwg.mxu0
    %v265 = vmax.f32 %v236, 0.0
    %v266 = vmax.f32 %v249, 0.0
    %v267 = vmax.f32 %v262, 0.0
    %v268 = vld [vmem:[%s3] sm:$0x7]
    %v270 = vperm.slane %v268, 0
    %v271 = vperm.slane %v268, 1
    %v272 = vperm.slane %v268, 2
    %v276 = vmul.f32 %v265, %v270
    %v277 = vmul.f32 %v266, %v271
    %v278 = vmul.f32 %v267, %v272
    %v279 = vpack.c.bf16 %v276, %v276
    %v280 = vpack.c.bf16 %v277, %v277
    %v281 = vpack.c.bf16 %v278, %v278
    %v282 = vld [vmem:[#allocation4] sm:$0xf]
    %v283 = vld [vmem:[#allocation4 + $0x4] sm:$0xf]
    %v284 = vld [vmem:[#allocation4 + $0x8] sm:$0xf]
    %v285 = vld [vmem:[#allocation4 + $0xc] sm:$0xf]
    %v286 = vld [vmem:[#allocation4 + $0x10] sm:$0xf]
    %v287 = vld [vmem:[#allocation4 + $0x14] sm:$0xf]
    %v288 = vld [vmem:[#allocation4 + $0x18] sm:$0xf]
    %v289 = vld [vmem:[#allocation4 + $0x1c] sm:$0xf]
    %v290 = vld [vmem:[#allocation4 + $0x20] sm:$0xf]
    %v291 = vld [vmem:[#allocation4 + $0x24] sm:$0xf]
    %v292 = vld [vmem:[#allocation4 + $0x28] sm:$0xf]
    %v293 = vld [vmem:[#allocation4 + $0x2c] sm:$0xf]
    %v294 = vld [vmem:[#allocation4 + $0x30] sm:$0xf]
    %v295 = vld [vmem:[#allocation4 + $0x34] sm:$0xf]
    %v296 = vld [vmem:[#allocation4 + $0x38] sm:$0xf]
    %v297 = vld [vmem:[#allocation4 + $0x3c] sm:$0xf]
    %v298 = vld [vmem:[#allocation4 + $0x40] sm:$0xf]
    %v299 = vld [vmem:[#allocation4 + $0x44] sm:$0xf]
    %v300 = vld [vmem:[#allocation4 + $0x48] sm:$0xf]
    %v301 = vld [vmem:[#allocation4 + $0x4c] sm:$0xf]
    %v302 = vld [vmem:[#allocation4 + $0x50] sm:$0xf]
    %v303 = vld [vmem:[#allocation4 + $0x54] sm:$0xf]
    %v304 = vld [vmem:[#allocation4 + $0x58] sm:$0xf]
    %v305 = vld [vmem:[#allocation4 + $0x5c] sm:$0xf]
    %v306 = vld [vmem:[#allocation4 + $0x60] sm:$0xf]
    %v307 = vld [vmem:[#allocation4 + $0x64] sm:$0xf]
    %v308 = vld [vmem:[#allocation4 + $0x68] sm:$0xf]
    %v309 = vld [vmem:[#allocation4 + $0x6c] sm:$0xf]
    %v310 = vld [vmem:[#allocation4 + $0x70] sm:$0xf]
    %v311 = vld [vmem:[#allocation4 + $0x74] sm:$0xf]
    %v312 = vld [vmem:[#allocation4 + $0x78] sm:$0xf]
    %v313 = vld [vmem:[#allocation4 + $0x7c] sm:$0xf]
    %v314 = vld [vmem:[#allocation4 + $0x80] sm:$0xf]
    %v315 = vld [vmem:[#allocation4 + $0x84] sm:$0xf]
    %v316 = vld [vmem:[#allocation4 + $0x88] sm:$0xf]
    %v317 = vld [vmem:[#allocation4 + $0x8c] sm:$0xf]
    %v318 = vld [vmem:[#allocation4 + $0x90] sm:$0xf]
    %v319 = vld [vmem:[#allocation4 + $0x94] sm:$0xf]
    %v320 = vld [vmem:[#allocation4 + $0x98] sm:$0xf]
    %v321 = vld [vmem:[#allocation4 + $0x9c] sm:$0xf]
    %v322 = vld [vmem:[#allocation4 + $0xa0] sm:$0xf]
    %v323 = vld [vmem:[#allocation4 + $0xa4] sm:$0xf]
    %v324 = vld [vmem:[#allocation4 + $0xa8] sm:$0xf]
    %v325 = vld [vmem:[#allocation4 + $0xac] sm:$0xf]
    %v326 = vld [vmem:[#allocation4 + $0xb0] sm:$0xf]
    %v327 = vld [vmem:[#allocation4 + $0xb4] sm:$0xf]
    %v328 = vld [vmem:[#allocation4 + $0xb8] sm:$0xf]
    %v329 = vld [vmem:[#allocation4 + $0xbc] sm:$0xf]
    %v330 = vld [vmem:[%s5] sm:$0x1]
    %v332 = vperm.slane %v330, 0
    %v382 = vunpack.c.l.b16 %v282
    %v383 = vunpack.c.l.b16 %v283
    %v384 = vunpack.c.l.b16 %v284
    %v385 = vunpack.c.l.b16 %v285
    %v386 = vunpack.c.l.b16 %v286
    %v387 = vunpack.c.l.b16 %v287
    %v388 = vunpack.c.l.b16 %v288
    %v389 = vunpack.c.l.b16 %v289
    %v390 = vunpack.c.l.b16 %v290
    %v391 = vunpack.c.l.b16 %v291
    %v392 = vunpack.c.l.b16 %v292
    %v393 = vunpack.c.l.b16 %v293
    %v394 = vunpack.c.l.b16 %v294
    %v395 = vunpack.c.l.b16 %v295
    %v396 = vunpack.c.l.b16 %v296
    %v397 = vunpack.c.l.b16 %v297
    %v398 = vunpack.c.l.b16 %v298
    %v399 = vunpack.c.l.b16 %v299
    %v400 = vunpack.c.l.b16 %v300
    %v401 = vunpack.c.l.b16 %v301
    %v402 = vunpack.c.l.b16 %v302
    %v403 = vunpack.c.l.b16 %v303
    %v404 = vunpack.c.l.b16 %v304
    %v405 = vunpack.c.l.b16 %v305
    %v406 = vunpack.c.l.b16 %v306
    %v407 = vunpack.c.l.b16 %v307
    %v408 = vunpack.c.l.b16 %v308
    %v409 = vunpack.c.l.b16 %v309
    %v410 = vunpack.c.l.b16 %v310
    %v411 = vunpack.c.l.b16 %v311
    %v412 = vunpack.c.l.b16 %v312
    %v413 = vunpack.c.l.b16 %v313
    %v414 = vunpack.c.l.b16 %v314
    %v415 = vunpack.c.l.b16 %v315
    %v416 = vunpack.c.l.b16 %v316
    %v417 = vunpack.c.l.b16 %v317
    %v418 = vunpack.c.l.b16 %v318
    %v419 = vunpack.c.l.b16 %v319
    %v420 = vunpack.c.l.b16 %v320
    %v421 = vunpack.c.l.b16 %v321
    %v422 = vunpack.c.l.b16 %v322
    %v423 = vunpack.c.l.b16 %v323
    %v424 = vunpack.c.l.b16 %v324
    %v425 = vunpack.c.l.b16 %v325
    %v426 = vunpack.c.l.b16 %v326
    %v427 = vunpack.c.l.b16 %v327
    %v428 = vunpack.c.l.b16 %v328
    %v429 = vunpack.c.l.b16 %v329
    %v430 = vpack.c.b16 %v383, %v382
    %v431 = vpack.c.b16 %v385, %v384
    %v432 = vpack.c.b16 %v387, %v386
    %v433 = vpack.c.b16 %v389, %v388
    %v434 = vpack.c.b16 %v391, %v390
    %v435 = vpack.c.b16 %v393, %v392
    %v436 = vpack.c.b16 %v395, %v394
    %v437 = vpack.c.b16 %v397, %v396
    %v438 = vpack.c.b16 %v399, %v398
    %v439 = vpack.c.b16 %v401, %v400
    %v440 = vpack.c.b16 %v403, %v402
    %v441 = vpack.c.b16 %v405, %v404
    %v442 = vpack.c.b16 %v407, %v406
    %v443 = vpack.c.b16 %v409, %v408
    %v444 = vpack.c.b16 %v411, %v410
    %v445 = vpack.c.b16 %v413, %v412
    %v446 = vpack.c.b16 %v415, %v414
    %v447 = vpack.c.b16 %v417, %v416
    %v448 = vpack.c.b16 %v419, %v418
    %v449 = vpack.c.b16 %v421, %v420
    %v450 = vpack.c.b16 %v423, %v422
    %v451 = vpack.c.b16 %v425, %v424
    %v452 = vpack.c.b16 %v427, %v426
    %v453 = vpack.c.b16 %v429, %v428
    %478 = vmatpush.bf16.msra.mxu0 %v437
    %479 = vmatpush.bf16.msra.mxu0 %v436
    %480 = vmatpush.bf16.msra.mxu0 %v435
    %481 = vmatpush.bf16.msra.mxu0 %v434
    %482 = vmatpush.bf16.msra.mxu0 %v433
    %483 = vmatpush.bf16.msra.mxu0 %v432
    %484 = vmatpush.bf16.msra.mxu0 %v431
    %485 = vmatpush.bf16.msra.mxu0 %v430
    %486 = vmatmul.bf16.gmra.mxu0 %v279
    %v487 = vpop.f32.mrf.mxu0
    %v488 = vadd.f32 %v332, %v487
    %v489 = vpop.f32.mrf.mxu0
    %490 = vdwg.mxu0
    %491 = vmatpush.bf16.msra.mxu0 %v445
    %492 = vmatpush.bf16.msra.mxu0 %v444
    %493 = vmatpush.bf16.msra.mxu0 %v443
    %494 = vmatpush.bf16.msra.mxu0 %v442
    %495 = vmatpush.bf16.msra.mxu0 %v441
    %496 = vmatpush.bf16.msra.mxu0 %v440
    %497 = vmatpush.bf16.msra.mxu0 %v439
    %498 = vmatpush.bf16.msra.mxu0 %v438
    %499 = vmatmul.bf16.gmra.mxu0 %v280
    %v500 = vpop.f32.mrf.mxu0
    %v501 = vadd.f32 %v488, %v500
    %v502 = vpop.f32.mrf.mxu0
    %503 = vdwg.mxu0
    %504 = vmatpush.bf16.msra.mxu0 %v453
    %505 = vmatpush.bf16.msra.mxu0 %v452
    %506 = vmatpush.bf16.msra.mxu0 %v451
    %507 = vmatpush.bf16.msra.mxu0 %v450
    %508 = vmatpush.bf16.msra.mxu0 %v449
    %509 = vmatpush.bf16.msra.mxu0 %v448
    %510 = vmatpush.bf16.msra.mxu0 %v447
    %511 = vmatpush.bf16.msra.mxu0 %v446
    %512 = vmatmul.bf16.gmra.mxu0 %v281
    %v513 = vpop.f32.mrf.mxu0
    %v514 = vadd.f32 %v501, %v513
    %v515 = vpop.f32.mrf.mxu0
    %516 = vdwg.mxu0
    %517 = vst [vmem:[%s6] sm:$0xff] %v514
    %518 = vst [vmem:[%s7] sm:$0xff] %v267
    // Predicated region
    $region34: #{ensemble_forward.1} parent=1 // pred_check
      _
    $region35: #{ensemble_forward.1} parent=1 // pred_check_branch
      %520 = sbr.rel (0) target = $region37
    $region36: #{ensemble_forward.1} parent=1 // pred_region
      _
    $region37: #{ensemble_forward.1} parent=1 // pred_fallthru
      _
    // Predicated region
    $region38: #{ensemble_forward.1} parent=1 // pred_check
      _
    $region39: #{ensemble_forward.1} parent=1 // pred_check_branch
      %522 = sbr.rel (0) target = $region41
    $region40: #{ensemble_forward.1} parent=1 // pred_region
      _
    $region41: #{ensemble_forward.1} parent=1 // pred_fallthru
      _
    // Predicated region
    $region42: #{ensemble_forward.1} parent=1 // pred_check
      _
    $region43: #{ensemble_forward.1} parent=1 // pred_check_branch
      %524 = sbr.rel (0) target = $region45
    $region44: #{ensemble_forward.1} parent=1 // pred_region
      _
    $region45: #{ensemble_forward.1} parent=1 // pred_fallthru
      _
    // Predicated region
    $region46: #{ensemble_forward.1} parent=1 // pred_check
      _
    $region47: #{ensemble_forward.1} parent=1 // pred_check_branch
      %526 = sbr.rel (0) target = $region49
    $region48: #{ensemble_forward.1} parent=1 // pred_region
      _
    $region49: #{ensemble_forward.1} parent=1 // pred_fallthru
      _
    %527 = vsyncpa [#allocation3], 1
    %528 = vsyncpa [#allocation5], 1

</llo_original>
